<compile_context>
chip_gen: v5e
topology: v5e:2x2
jax: 0.10.0
libtpu: 0.0.40
codegen_flags: <defaults>
</compile_context>

<pallas_src>
import functools

import jax
import jax.numpy as jnp
from jax.experimental import pallas as pl
from jax.experimental.pallas import tpu as pltpu


def cvae_kernel(x_ref, eps_ref, label_ref,
                w_xms_ref, b_ms_ref,
                w_zrec_ref, w_lrec_ref, b_rec_ref,
                out_ref, *, latent_dim, d_out):
    L = latent_dim

    # Fused encoder + fc_mu + fc_sig: one (TB, D_in) x (D_in, 2L) MXU pass.
    musig = (jnp.dot(x_ref[...], w_xms_ref[...],
                     preferred_element_type=jnp.float32)
             + b_ms_ref[...])
    mu = musig[:, :L]
    log_var = musig[:, L:]

    # Reparameterize: z = eps * exp(0.5 * log_var) + mu   (VPU/EUP, f32)
    z = eps_ref[...] * jnp.exp(0.5 * log_var) + mu

    # Fused fc_dec + decoder, concat-free:
    #   recon = [z | label] @ (Wdf @ Wd) + (bdf @ Wd + bd)
    #         = z @ Wc[:L] + label * Wc[L] + b_comb
    recon = (jnp.dot(z, w_zrec_ref[...], preferred_element_type=jnp.float32)
             + label_ref[...] * w_lrec_ref[...]
             + b_rec_ref[...])

    # Single lane-dense output slab: [ recon | mu | log_var ].
    out_ref[:, :d_out] = recon
    out_ref[:, d_out:] = musig


def cvae_forward(x, label, eps, folded, *, tile_b=256):
    """Whole CVAE forward in one pallas_call, gridded over batch tiles."""
    B, D_in = x.shape
    L = eps.shape[1]
    D_out = folded["w_zrec"].shape[1]

    TB = min(tile_b, B)
    Bp = pl.cdiv(B, TB) * TB
    if Bp != B:  # pad batch so the tile grid divides evenly
        pad = Bp - B
        x = jnp.pad(x, ((0, pad), (0, 0)))
        eps = jnp.pad(eps, ((0, pad), (0, 0)))
        label = jnp.pad(label, ((0, pad), (0, 0)))

    grid = (Bp // TB,)

    def act_spec(n):                     # per-tile activation blocks
        return pl.BlockSpec((TB, n), lambda i: (i, 0))

    def w_spec(shape):                   # weights: constant block -> stay VMEM-resident
        return pl.BlockSpec(shape, lambda i: (0, 0))

    kernel = functools.partial(cvae_kernel, latent_dim=L, d_out=D_out)

    out = pl.pallas_call(
        kernel,
        out_shape=jax.ShapeDtypeStruct((Bp, D_out + 2 * L), jnp.float32),
        grid=grid,
        in_specs=[
            act_spec(D_in),                     # x
            act_spec(L),                        # eps
            act_spec(1),                        # label
            w_spec(folded["w_xms"].shape),      # (D_in, 2L)
            w_spec(folded["b_ms"].shape),       # (1, 2L)
            w_spec(folded["w_zrec"].shape),     # (L, D_out)
            w_spec(folded["w_lrec"].shape),     # (1, D_out)
            w_spec(folded["b_rec"].shape),      # (1, D_out)
        ],
        out_specs=act_spec(D_out + 2 * L),
        compiler_params=pltpu.CompilerParams(
            dimension_semantics=("parallel",),  # split batch tiles across TCs (v7x)
        ),
    )(x, eps, label,
      folded["w_xms"], folded["b_ms"],
      folded["w_zrec"], folded["w_lrec"], folded["b_rec"])

    recon = out[:B, :D_out]
    mu = out[:B, D_out:D_out + L]
    log_var = out[:B, D_out + L:]
    return recon, mu, log_var


def make_params(key, d_in, latent_dim):
    """Deterministic PyTorch-Linear-shaped params, stored [in_features, out_features]."""
    ks = jax.random.split(key, 10)
    s = 0.05
    L = latent_dim
    return {
        # encoder: Linear(d_in -> L)
        "we":   s * jax.random.normal(ks[0], (d_in, L), jnp.float32),
        "be":   s * jax.random.normal(ks[1], (1, L), jnp.float32),
        # fc_mu / fc_sig: Linear(L -> L)
        "wmu":  s * jax.random.normal(ks[2], (L, L), jnp.float32),
        "bmu":  s * jax.random.normal(ks[3], (1, L), jnp.float32),
        "wsig": s * jax.random.normal(ks[4], (L, L), jnp.float32),
        "bsig": s * jax.random.normal(ks[5], (1, L), jnp.float32),
        # fc_dec: Linear(L+1 -> L+1)
        "wdf":  s * jax.random.normal(ks[6], (L + 1, L + 1), jnp.float32),
        "bdf":  s * jax.random.normal(ks[7], (1, L + 1), jnp.float32),
        # decoder: Linear(L+1 -> d_in)
        "wd":   s * jax.random.normal(ks[8], (L + 1, d_in), jnp.float32),
        "bd":   s * jax.random.normal(ks[9], (1, d_in), jnp.float32),
    }


def fold_params(raw):
    """Pre-fold the linear chains (exact: no nonlinearity between the folded stages)."""
    L = raw["wmu"].shape[0]
    wmusig = jnp.concatenate([raw["wmu"], raw["wsig"]], axis=1)   # (L, 2L)
    bmusig = jnp.concatenate([raw["bmu"], raw["bsig"]], axis=1)   # (1, 2L)
    w_xms = raw["we"] @ wmusig                                    # encoder folded in
    b_ms = raw["be"] @ wmusig + bmusig
    w_comb = raw["wdf"] @ raw["wd"]                               # fc_dec folded into decoder
    b_rec = raw["bdf"] @ raw["wd"] + raw["bd"]
    return {
        "w_xms": w_xms, "b_ms": b_ms,
        "w_zrec": w_comb[:L, :],        # multiplies z
        "w_lrec": w_comb[L:L + 1, :],   # multiplies label (the concat column)
        "b_rec": b_rec,
    }


def reference_forward(x, label, eps, p):
    """Pure-JAX reference following the PyTorch module stage-by-stage (unfused)."""
    h = x @ p["we"] + p["be"]
    mu = h @ p["wmu"] + p["bmu"]
    log_var = h @ p["wsig"] + p["bsig"]
    z = eps * jnp.exp(0.5 * log_var) + mu
    zc = jnp.concatenate([z, label], axis=-1)
    pre = zc @ p["wdf"] + p["bdf"]
    recon = pre @ p["wd"] + p["bd"]
    return recon, mu, log_var


if __name__ == "__main__":
    B, D_IN, LATENT = 512, 64, 32   # D_out + 2L = 128 -> lane-dense output slab

    key = jax.random.PRNGKey(0)
    k_x, k_lbl, k_eps, k_par = jax.random.split(key, 4)

    x = jax.random.normal(k_x, (B, D_IN), jnp.float32)
    label = jax.random.randint(k_lbl, (B, 1), 0, 4).astype(jnp.float32)
    eps = jax.random.normal(k_eps, (B, LATENT), jnp.float32)   # reparam noise
    raw = make_params(k_par, D_IN, LATENT)
    folded = fold_params(raw)

    recon, mu, log_var = cvae_forward(x, label, eps, folded, tile_b=256)
    jax.block_until_ready((recon, mu, log_var))

    # Sanity check against the unfused pure-JAX reference (weight folding introduces
    # only f32 rounding-level differences).
    r_ref, mu_ref, lv_ref = reference_forward(x, label, eps, raw)
    assert jnp.allclose(recon, r_ref, atol=1e-4, rtol=1e-3), "recon mismatch"
    assert jnp.allclose(mu, mu_ref, atol=1e-4, rtol=1e-3), "mu mismatch"
    assert jnp.allclose(log_var, lv_ref, atol=1e-4, rtol=1e-3), "log_var mismatch"

    print("KERNEL_OK")
</pallas_src>

<mosaic_0001>
module attributes {stable_mosaic.version = 11 : i64} {
  func.func @cvae_kernel(%arg0: i32, %arg1: memref<256x64xf32, #tpu.memory_space<vmem>>, %arg2: memref<256x32xf32, #tpu.memory_space<vmem>>, %arg3: memref<256x1xf32, #tpu.memory_space<vmem>>, %arg4: memref<64x64xf32, #tpu.memory_space<vmem>>, %arg5: memref<1x64xf32, #tpu.memory_space<vmem>>, %arg6: memref<32x64xf32, #tpu.memory_space<vmem>>, %arg7: memref<1x64xf32, #tpu.memory_space<vmem>>, %arg8: memref<1x64xf32, #tpu.memory_space<vmem>>, %arg9: memref<256x128xf32, #tpu.memory_space<vmem>>) attributes {dimension_semantics = [#tpu.dimension_semantics<parallel>], iteration_bounds = array<i64: 2>, scalar_prefetch = 0 : i64, scratch_operands = 0 : i64, tpu.core_type = #tpu.core_type<tc>, window_params = [{transform_indices = @transform_0, window_bounds = array<i64: 256, 64>}, {transform_indices = @transform_1, window_bounds = array<i64: 256, 32>}, {transform_indices = @transform_2, window_bounds = array<i64: 256, 1>}, {pipeline_mode = #tpu.pipeline_mode<synchronous>, transform_indices = @transform_3, window_bounds = array<i64: 64, 64>}, {pipeline_mode = #tpu.pipeline_mode<synchronous>, transform_indices = @transform_4, window_bounds = array<i64: 1, 64>}, {pipeline_mode = #tpu.pipeline_mode<synchronous>, transform_indices = @transform_5, window_bounds = array<i64: 32, 64>}, {pipeline_mode = #tpu.pipeline_mode<synchronous>, transform_indices = @transform_6, window_bounds = array<i64: 1, 64>}, {pipeline_mode = #tpu.pipeline_mode<synchronous>, transform_indices = @transform_7, window_bounds = array<i64: 1, 64>}, {transform_indices = @transform_8, window_bounds = array<i64: 256, 128>}]} {
    %c0 = arith.constant 0 : index
    %c0_0 = arith.constant 0 : index
    %0 = vector.load %arg1[%c0, %c0_0] : memref<256x64xf32, #tpu.memory_space<vmem>>, vector<256x64xf32>
    %c0_1 = arith.constant 0 : index
    %c0_2 = arith.constant 0 : index
    %1 = vector.load %arg4[%c0_1, %c0_2] : memref<64x64xf32, #tpu.memory_space<vmem>>, vector<64x64xf32>
    %cst = arith.constant dense<0.000000e+00> : vector<256x64xf32>
    %2 = tpu.matmul %0, %1, %cst {dimension_numbers = #tpu.dot_dimension_numbers<[1], [0], [0], [1], [0, 0, 1, 1], [], []>} : vector<256x64xf32>, vector<64x64xf32>, vector<256x64xf32> -> vector<256x64xf32>
    %c0_3 = arith.constant 0 : index
    %c0_4 = arith.constant 0 : index
    %3 = vector.load %arg5[%c0_3, %c0_4] : memref<1x64xf32, #tpu.memory_space<vmem>>, vector<1x64xf32>
    %4 = vector.broadcast %3 : vector<1x64xf32> to vector<256x64xf32>
    %5 = arith.addf %2, %4 : vector<256x64xf32>
    %6 = vector.extract_strided_slice %5 {offsets = [0, 0], sizes = [256, 32], strides = [1, 1]} : vector<256x64xf32> to vector<256x32xf32>
    %7 = vector.extract_strided_slice %5 {offsets = [0, 32], sizes = [256, 32], strides = [1, 1]} : vector<256x64xf32> to vector<256x32xf32>
    %c0_5 = arith.constant 0 : index
    %c0_6 = arith.constant 0 : index
    %8 = vector.load %arg2[%c0_5, %c0_6] : memref<256x32xf32, #tpu.memory_space<vmem>>, vector<256x32xf32>
    %cst_7 = arith.constant 5.000000e-01 : f32
    %9 = vector.broadcast %cst_7 : f32 to vector<256x32xf32>
    %10 = arith.mulf %9, %7 : vector<256x32xf32>
    %11 = math.exp %10 : vector<256x32xf32>
    %12 = arith.mulf %8, %11 : vector<256x32xf32>
    %13 = arith.addf %12, %6 : vector<256x32xf32>
    %c0_8 = arith.constant 0 : index
    %c0_9 = arith.constant 0 : index
    %14 = vector.load %arg6[%c0_8, %c0_9] : memref<32x64xf32, #tpu.memory_space<vmem>>, vector<32x64xf32>
    %cst_10 = arith.constant dense<0.000000e+00> : vector<256x64xf32>
    %15 = tpu.matmul %13, %14, %cst_10 {dimension_numbers = #tpu.dot_dimension_numbers<[1], [0], [0], [1], [0, 0, 1, 1], [], []>} : vector<256x32xf32>, vector<32x64xf32>, vector<256x64xf32> -> vector<256x64xf32>
    %c0_11 = arith.constant 0 : index
    %c0_12 = arith.constant 0 : index
    %16 = vector.load %arg3[%c0_11, %c0_12] : memref<256x1xf32, #tpu.memory_space<vmem>>, vector<256x1xf32>
    %c0_13 = arith.constant 0 : index
    %c0_14 = arith.constant 0 : index
    %17 = vector.load %arg7[%c0_13, %c0_14] : memref<1x64xf32, #tpu.memory_space<vmem>>, vector<1x64xf32>
    %18 = vector.broadcast %16 : vector<256x1xf32> to vector<256x64xf32>
    %19 = vector.broadcast %17 : vector<1x64xf32> to vector<256x64xf32>
    %20 = arith.mulf %18, %19 : vector<256x64xf32>
    %21 = arith.addf %15, %20 : vector<256x64xf32>
    %c0_15 = arith.constant 0 : index
    %c0_16 = arith.constant 0 : index
    %22 = vector.load %arg8[%c0_15, %c0_16] : memref<1x64xf32, #tpu.memory_space<vmem>>, vector<1x64xf32>
    %23 = vector.broadcast %22 : vector<1x64xf32> to vector<256x64xf32>
    %24 = arith.addf %21, %23 : vector<256x64xf32>
    %c0_17 = arith.constant 0 : index
    %c0_18 = arith.constant 0 : index
    %25 = vector.load %arg9[%c0_17, %c0_18] : memref<256x128xf32, #tpu.memory_space<vmem>>, vector<256x64xf32>
    tpu.vector_store %arg9[%c0_17, %c0_18], %24 {strides = array<i32>} : memref<256x128xf32, #tpu.memory_space<vmem>>, vector<256x64xf32>,
    %c0_19 = arith.constant 0 : index
    %c64 = arith.constant 64 : index
    %26 = vector.load %arg9[%c0_19, %c64] : memref<256x128xf32, #tpu.memory_space<vmem>>, vector<256x64xf32>
    tpu.vector_store %arg9[%c0_19, %c64], %5 {strides = array<i32>} : memref<256x128xf32, #tpu.memory_space<vmem>>, vector<256x64xf32>,
    return
  }
  func.func @transform_0(%arg0: i32) -> (i32, i32) {
    %c0_i32 = arith.constant 0 : i32
    %c0_i32_0 = arith.constant 0 : i32
    return %arg0, %c0_i32 : i32, i32
  }
  func.func @transform_1(%arg0: i32) -> (i32, i32) {
    %c0_i32 = arith.constant 0 : i32
    %c0_i32_0 = arith.constant 0 : i32
    return %arg0, %c0_i32 : i32, i32
  }
  func.func @transform_2(%arg0: i32) -> (i32, i32) {
    %c0_i32 = arith.constant 0 : i32
    %c0_i32_0 = arith.constant 0 : i32
    return %arg0, %c0_i32 : i32, i32
  }
  func.func @transform_3(%arg0: i32) -> (i32, i32) {
    %c0_i32 = arith.constant 0 : i32
    %c0_i32_0 = arith.constant 0 : i32
    %c0_i32_1 = arith.constant 0 : i32
    return %c0_i32, %c0_i32_0 : i32, i32
  }
  func.func @transform_4(%arg0: i32) -> (i32, i32) {
    %c0_i32 = arith.constant 0 : i32
    %c0_i32_0 = arith.constant 0 : i32
    %c0_i32_1 = arith.constant 0 : i32
    return %c0_i32, %c0_i32_0 : i32, i32
  }
  func.func @transform_5(%arg0: i32) -> (i32, i32) {
    %c0_i32 = arith.constant 0 : i32
    %c0_i32_0 = arith.constant 0 : i32
    %c0_i32_1 = arith.constant 0 : i32
    return %c0_i32, %c0_i32_0 : i32, i32
  }
  func.func @transform_6(%arg0: i32) -> (i32, i32) {
    %c0_i32 = arith.constant 0 : i32
    %c0_i32_0 = arith.constant 0 : i32
    %c0_i32_1 = arith.constant 0 : i32
    return %c0_i32, %c0_i32_0 : i32, i32
  }
  func.func @transform_7(%arg0: i32) -> (i32, i32) {
    %c0_i32 = arith.constant 0 : i32
    %c0_i32_0 = arith.constant 0 : i32
    %c0_i32_1 = arith.constant 0 : i32
    return %c0_i32, %c0_i32_0 : i32, i32
  }
  func.func @transform_8(%arg0: i32) -> (i32, i32) {
    %c0_i32 = arith.constant 0 : i32
    %c0_i32_0 = arith.constant 0 : i32
    return %arg0, %c0_i32 : i32, i32
  }
}

</mosaic_0001>

<llo_original>
// kernel: tpu_custom_call.1
$region0: #{tpu_custom_call.1}
  #allocation0 [shape = 'u32[]', space=smem, size = 0x4, offset = 0x4, fixed_abs, tag = 'smem constant byte address 0x4 - core index']
  #allocation1 [shape = 'u32[72,128]{1,0:T(1,128)}', space=vmem, size = 0x9000, scoped, tag = 'internal scratch']
  %s0 = inlined_call_operand.vmem [shape: f32[512,64], index: 0, kind: input, shape index: {}]
  %s1 = inlined_call_operand.vmem [shape: f32[512,32], index: 1, kind: input, shape index: {}]
  %s2 = inlined_call_operand.vmem [shape: f32[512,1], index: 2, kind: input, shape index: {}]
  %s3 = inlined_call_operand.vmem [shape: f32[64,64], index: 3, kind: input, shape index: {}]
  %s4 = inlined_call_operand.vmem [shape: f32[1,64], index: 4, kind: input, shape index: {}]
  %s5 = inlined_call_operand.vmem [shape: f32[32,64], index: 5, kind: input, shape index: {}]
  %s6 = inlined_call_operand.vmem [shape: f32[1,64], index: 6, kind: input, shape index: {}]
  %s7 = inlined_call_operand.vmem [shape: f32[1,64], index: 7, kind: input, shape index: {}]
  %s8 = inlined_call_operand.hbm [shape: f32[512,128], index: 8, kind: output, shape index: {}]
  %s9 = sld [smem:[#allocation0]]
  $region65: #{tpu_custom_call.1} parent=0
    _
  %s11 = ssub.s32 1, %s9
  %s12 = scalar_select 0, %s11, %s9
  $region1: #{tpu_custom_call.1} parent=0
    #allocation2 [shape = 'u8[262144]{0}', space=vmem, size = 0x40000, scoped, tag = 'output window, operand 0']
    #allocation3 [shape = 's32[2]{0}', space=sflag, size = 0x8, scoped, tag = 'scoped memory for tpu_custom_call.1']
    %13 = vsyncpa [#allocation3], 0
    %s14 = scalar_lea.sflag [#allocation3], 1
    %15 = vsyncpa %s14, 0
    loop: start=0, step=1, limit=4
    $region2: #{tpu_custom_call.1} parent=1 // loop_pre_header
      _
    $region3: #{tpu_custom_call.1} parent=1 // loop_header
      %s17 = sphi 0, %s21
      %p18 = scmp.ge.s32.totalorder %s17, 4
      %s27 = sphi 0, %s29
      %s30 = sphi 0, %s27
      %s31 = sphi 0, %s30
      %s47 = sphi 0, %s31
      %s53 = sphi 0, %s55
      %s56 = sphi 0, %s53
      %s57 = sphi 0, %s56
      %s73 = sphi 0, %s57
      %s79 = sphi 0, %s81
      %s82 = sphi 0, %s79
      %s83 = sphi 0, %s82
      %s99 = sphi 0, %s83
      %s103 = sphi 0, %s103
      %s105 = sphi 0, %s103
      %s106 = sphi 0, %s105
      %s120 = sphi 0, %s106
      %s124 = sphi 0, %s124
      %s126 = sphi 0, %s124
      %s127 = sphi 0, %s126
      %s141 = sphi 0, %s127
      %s145 = sphi 0, %s145
      %s147 = sphi 0, %s145
      %s148 = sphi 0, %s147
      %s162 = sphi 0, %s148
      %s166 = sphi 0, %s166
      %s168 = sphi 0, %s166
      %s169 = sphi 0, %s168
      %s183 = sphi 0, %s169
      %s187 = sphi 0, %s187
      %s189 = sphi 0, %s187
      %s190 = sphi 0, %s189
      %s204 = sphi 0, %s190
      %s210 = sphi 0, %s212
      %s213 = sphi 0, %s210
      %s214 = sphi 0, %s213
      %s230 = sphi 0, %s214
    $region4: #{tpu_custom_call.1} parent=1 // loop_header_branch
      %20 = sbr.rel (%p18) target = $region8
    $region5: #{tpu_custom_call.1} parent=1 // loop_body
      %s22 = ssub.s32 %s17, 1
      %s23 = ssub.s32 %s17, 2
      %s24 = sadd.s32 %s17, 1
      %s25 = ssub.s32 %s17, %s24
      %p26 = scmp.eq.s32.totalorder %s25, 0
      %s28 = sadd.s32 %s27, 1
      %s29 = scalar_select %p26, %s27, %s28
      %p32 = pneg %p26
      %p33 = scmp.eq.s32.totalorder %s17, 1
      %p34 = por %p32, %p33
      %p35 = scmp.ne.s32.totalorder %s27, %s30
      %p36 = scmp.eq.s32.totalorder %s17, 0
      %p37 = por %p35, %p36
      %p38 = scmp.ne.s32.totalorder %s27, %s30
      %p39 = scmp.eq.s32.totalorder %s22, 1
      %p40 = por %p38, %p39
      %p41 = scmp.ne.s32.totalorder %s30, %s31
      %p42 = scmp.eq.s32.totalorder %s22, 0
      %p43 = por %p41, %p42
      %p44 = scmp.ne.s32.totalorder %s30, %s31
      %p45 = scmp.eq.s32.totalorder %s23, 1
      %p46 = por %p44, %p45
      %p48 = scmp.ne.s32.totalorder %s31, %s47
      %p49 = scmp.eq.s32.totalorder %s23, 0
      %p50 = por %p48, %p49
      %s51 = ssub.s32 %s17, %s24
      %p52 = scmp.eq.s32.totalorder %s51, 0
      %s54 = sadd.s32 %s53, 1
      %s55 = scalar_select %p52, %s53, %s54
      %p58 = pneg %p52
      %p59 = scmp.eq.s32.totalorder %s17, 1
      %p60 = por %p58, %p59
      %p61 = scmp.ne.s32.totalorder %s53, %s56
      %p62 = scmp.eq.s32.totalorder %s17, 0
      %p63 = por %p61, %p62
      %p64 = scmp.ne.s32.totalorder %s53, %s56
      %p65 = scmp.eq.s32.totalorder %s22, 1
      %p66 = por %p64, %p65
      %p67 = scmp.ne.s32.totalorder %s56, %s57
      %p68 = scmp.eq.s32.totalorder %s22, 0
      %p69 = por %p67, %p68
      %p70 = scmp.ne.s32.totalorder %s56, %s57
      %p71 = scmp.eq.s32.totalorder %s23, 1
      %p72 = por %p70, %p71
      %p74 = scmp.ne.s32.totalorder %s57, %s73
      %p75 = scmp.eq.s32.totalorder %s23, 0
      %p76 = por %p74, %p75
      %s77 = ssub.s32 %s17, %s24
      %p78 = scmp.eq.s32.totalorder %s77, 0
      %s80 = sadd.s32 %s79, 1
      %s81 = scalar_select %p78, %s79, %s80
      %p84 = pneg %p78
      %p85 = scmp.eq.s32.totalorder %s17, 1
      %p86 = por %p84, %p85
      %p87 = scmp.ne.s32.totalorder %s79, %s82
      %p88 = scmp.eq.s32.totalorder %s17, 0
      %p89 = por %p87, %p88
      %p90 = scmp.ne.s32.totalorder %s79, %s82
      %p91 = scmp.eq.s32.totalorder %s22, 1
      %p92 = por %p90, %p91
      %p93 = scmp.ne.s32.totalorder %s82, %s83
      %p94 = scmp.eq.s32.totalorder %s22, 0
      %p95 = por %p93, %p94
      %p96 = scmp.ne.s32.totalorder %s82, %s83
      %p97 = scmp.eq.s32.totalorder %s23, 1
      %p98 = por %p96, %p97
      %p100 = scmp.ne.s32.totalorder %s83, %s99
      %p101 = scmp.eq.s32.totalorder %s23, 0
      %p102 = por %p100, %p101
      %s104 = sadd.s32 %s103, 1
      %p107 = scmp.eq.s32.totalorder %s17, 1
      %p108 = scmp.ne.s32.totalorder %s103, %s105
      %p109 = scmp.eq.s32.totalorder %s17, 0
      %p110 = por %p108, %p109
      %p111 = scmp.ne.s32.totalorder %s103, %s105
      %p112 = scmp.eq.s32.totalorder %s22, 1
      %p113 = por %p111, %p112
      %p114 = scmp.ne.s32.totalorder %s105, %s106
      %p115 = scmp.eq.s32.totalorder %s22, 0
      %p116 = por %p114, %p115
      %p117 = scmp.ne.s32.totalorder %s105, %s106
      %p118 = scmp.eq.s32.totalorder %s23, 1
      %p119 = por %p117, %p118
      %p121 = scmp.ne.s32.totalorder %s106, %s120
      %p122 = scmp.eq.s32.totalorder %s23, 0
      %p123 = por %p121, %p122
      %s125 = sadd.s32 %s124, 1
      %p128 = scmp.eq.s32.totalorder %s17, 1
      %p129 = scmp.ne.s32.totalorder %s124, %s126
      %p130 = scmp.eq.s32.totalorder %s17, 0
      %p131 = por %p129, %p130
      %p132 = scmp.ne.s32.totalorder %s124, %s126
      %p133 = scmp.eq.s32.totalorder %s22, 1
      %p134 = por %p132, %p133
      %p135 = scmp.ne.s32.totalorder %s126, %s127
      %p136 = scmp.eq.s32.totalorder %s22, 0
      %p137 = por %p135, %p136
      %p138 = scmp.ne.s32.totalorder %s126, %s127
      %p139 = scmp.eq.s32.totalorder %s23, 1
      %p140 = por %p138, %p139
      %p142 = scmp.ne.s32.totalorder %s127, %s141
      %p143 = scmp.eq.s32.totalorder %s23, 0
      %p144 = por %p142, %p143
      %s146 = sadd.s32 %s145, 1
      %p149 = scmp.eq.s32.totalorder %s17, 1
      %p150 = scmp.ne.s32.totalorder %s145, %s147
      %p151 = scmp.eq.s32.totalorder %s17, 0
      %p152 = por %p150, %p151
      %p153 = scmp.ne.s32.totalorder %s145, %s147
      %p154 = scmp.eq.s32.totalorder %s22, 1
      %p155 = por %p153, %p154
      %p156 = scmp.ne.s32.totalorder %s147, %s148
      %p157 = scmp.eq.s32.totalorder %s22, 0
      %p158 = por %p156, %p157
      %p159 = scmp.ne.s32.totalorder %s147, %s148
      %p160 = scmp.eq.s32.totalorder %s23, 1
      %p161 = por %p159, %p160
      %p163 = scmp.ne.s32.totalorder %s148, %s162
      %p164 = scmp.eq.s32.totalorder %s23, 0
      %p165 = por %p163, %p164
      %s167 = sadd.s32 %s166, 1
      %p170 = scmp.eq.s32.totalorder %s17, 1
      %p171 = scmp.ne.s32.totalorder %s166, %s168
      %p172 = scmp.eq.s32.totalorder %s17, 0
      %p173 = por %p171, %p172
      %p174 = scmp.ne.s32.totalorder %s166, %s168
      %p175 = scmp.eq.s32.totalorder %s22, 1
      %p176 = por %p174, %p175
      %p177 = scmp.ne.s32.totalorder %s168, %s169
      %p178 = scmp.eq.s32.totalorder %s22, 0
      %p179 = por %p177, %p178
      %p180 = scmp.ne.s32.totalorder %s168, %s169
      %p181 = scmp.eq.s32.totalorder %s23, 1
      %p182 = por %p180, %p181
      %p184 = scmp.ne.s32.totalorder %s169, %s183
      %p185 = scmp.eq.s32.totalorder %s23, 0
      %p186 = por %p184, %p185
      %s188 = sadd.s32 %s187, 1
      %p191 = scmp.eq.s32.totalorder %s17, 1
      %p192 = scmp.ne.s32.totalorder %s187, %s189
      %p193 = scmp.eq.s32.totalorder %s17, 0
      %p194 = por %p192, %p193
      %p195 = scmp.ne.s32.totalorder %s187, %s189
      %p196 = scmp.eq.s32.totalorder %s22, 1
      %p197 = por %p195, %p196
      %p198 = scmp.ne.s32.totalorder %s189, %s190
      %p199 = scmp.eq.s32.totalorder %s22, 0
      %p200 = por %p198, %p199
      %p201 = scmp.ne.s32.totalorder %s189, %s190
      %p202 = scmp.eq.s32.totalorder %s23, 1
      %p203 = por %p201, %p202
      %p205 = scmp.ne.s32.totalorder %s190, %s204
      %p206 = scmp.eq.s32.totalorder %s23, 0
      %p207 = por %p205, %p206
      %s208 = ssub.s32 %s17, %s24
      %p209 = scmp.eq.s32.totalorder %s208, 0
      %s211 = sadd.s32 %s210, 1
      %s212 = scalar_select %p209, %s210, %s211
      %p215 = pneg %p209
      %p216 = scmp.eq.s32.totalorder %s17, 1
      %p217 = por %p215, %p216
      %p218 = scmp.ne.s32.totalorder %s210, %s213
      %p219 = scmp.eq.s32.totalorder %s17, 0
      %p220 = por %p218, %p219
      %p221 = scmp.ne.s32.totalorder %s210, %s213
      %p222 = scmp.eq.s32.totalorder %s22, 1
      %p223 = por %p221, %p222
      %p224 = scmp.ne.s32.totalorder %s213, %s214
      %p225 = scmp.eq.s32.totalorder %s22, 0
      %p226 = por %p224, %p225
      %p227 = scmp.ne.s32.totalorder %s213, %s214
      %p228 = scmp.eq.s32.totalorder %s23, 1
      %p229 = por %p227, %p228
      %p231 = scmp.ne.s32.totalorder %s214, %s230
      %p232 = scmp.eq.s32.totalorder %s23, 0
      %p233 = por %p231, %p232
      %p234 = scmp.le.s32.totalorder 1, %s17
      %p235 = scmp.lt.s32.totalorder %s17, 3
      %p236 = pnand %p234, %p235
      %p237 = pneg %p236
      // Predicated region
      $region9: #{tpu_custom_call.1} parent=5 // pred_check
        _
      $region10: #{tpu_custom_call.1} parent=5 // pred_check_branch
        %239 = sbr.rel (%p236) target = $region12
      $region11: #{tpu_custom_call.1} parent=5 // pred_region
        %s240 = ssub.s32 %s17, 1
        // Predicated region
        $region13: #{tpu_custom_call.1} parent=11 // pred_check
          %p241 = pneg %p116
        $region14: #{tpu_custom_call.1} parent=11 // pred_check_branch
          %243 = sbr.rel (%p241) target = $region16
        $region15: #{tpu_custom_call.1} parent=11 // pred_region
          _
        $region16: #{tpu_custom_call.1} parent=11 // pred_fallthru
          _
        // Predicated region
        $region17: #{tpu_custom_call.1} parent=11 // pred_check
          %p244 = pneg %p137
        $region18: #{tpu_custom_call.1} parent=11 // pred_check_branch
          %246 = sbr.rel (%p244) target = $region20
        $region19: #{tpu_custom_call.1} parent=11 // pred_region
          _
        $region20: #{tpu_custom_call.1} parent=11 // pred_fallthru
          _
        // Predicated region
        $region21: #{tpu_custom_call.1} parent=11 // pred_check
          %p247 = pneg %p158
        $region22: #{tpu_custom_call.1} parent=11 // pred_check_branch
          %249 = sbr.rel (%p247) target = $region24
        $region23: #{tpu_custom_call.1} parent=11 // pred_region
          _
        $region24: #{tpu_custom_call.1} parent=11 // pred_fallthru
          _
        // Predicated region
        $region25: #{tpu_custom_call.1} parent=11 // pred_check
          %p250 = pneg %p179
        $region26: #{tpu_custom_call.1} parent=11 // pred_check_branch
          %252 = sbr.rel (%p250) target = $region28
        $region27: #{tpu_custom_call.1} parent=11 // pred_region
          _
        $region28: #{tpu_custom_call.1} parent=11 // pred_fallthru
          _
        // Predicated region
        $region29: #{tpu_custom_call.1} parent=11 // pred_check
          %p253 = pneg %p200
        $region30: #{tpu_custom_call.1} parent=11 // pred_check_branch
          %255 = sbr.rel (%p253) target = $region32
        $region31: #{tpu_custom_call.1} parent=11 // pred_region
          _
        $region32: #{tpu_custom_call.1} parent=11 // pred_fallthru
          _
      $region12: #{tpu_custom_call.1} parent=5 // pred_fallthru
        _
      %p256 = scmp.lt.s32.totalorder %s17, 2
      // Predicated region
      $region33: #{tpu_custom_call.1} parent=5 // pred_check
        %p257 = pneg %p256
      $region34: #{tpu_custom_call.1} parent=5 // pred_check_branch
        %259 = sbr.rel (%p257) target = $region36
      $region35: #{tpu_custom_call.1} parent=5 // pred_region
        // Predicated region
        $region37: #{tpu_custom_call.1} parent=35 // pred_check
          %p260 = pneg %p37
        $region38: #{tpu_custom_call.1} parent=35 // pred_check_branch
          %262 = sbr.rel (%p260) target = $region40
        $region39: #{tpu_custom_call.1} parent=35 // pred_region
          %s263 = smul.u32 32, %s17
          %p264 = scmp.lt.s32.totalorder %s263, 63
          %s265 = scalar_select %p264, %s263, 63
          %s266 = smul.addr %s265, 8
          %s267 = scalar_lea.vmem %s0, %s266
          %s268 = smul.u32 32, %s17
        $region40: #{tpu_custom_call.1} parent=35 // pred_fallthru
          _
        // Predicated region
        $region41: #{tpu_custom_call.1} parent=35 // pred_check
          %p269 = pneg %p63
        $region42: #{tpu_custom_call.1} parent=35 // pred_check_branch
          %271 = sbr.rel (%p269) target = $region44
        $region43: #{tpu_custom_call.1} parent=35 // pred_region
          %s272 = smul.u32 32, %s17
          %p273 = scmp.lt.s32.totalorder %s272, 63
          %s274 = scalar_select %p273, %s272, 63
          %s275 = smul.addr %s274, 8
          %s276 = scalar_lea.vmem %s1, %s275
          %s277 = smul.u32 32, %s17
        $region44: #{tpu_custom_call.1} parent=35 // pred_fallthru
          _
        // Predicated region
        $region45: #{tpu_custom_call.1} parent=35 // pred_check
          %p278 = pneg %p89
        $region46: #{tpu_custom_call.1} parent=35 // pred_check_branch
          %280 = sbr.rel (%p278) target = $region48
        $region47: #{tpu_custom_call.1} parent=35 // pred_region
          %s281 = smul.u32 32, %s17
          %p282 = scmp.lt.s32.totalorder %s281, 63
          %s283 = scalar_select %p282, %s281, 63
          %s284 = smul.addr %s283, 8
          %s285 = scalar_lea.vmem %s2, %s284
          %s286 = smul.u32 32, %s17
        $region48: #{tpu_custom_call.1} parent=35 // pred_fallthru
          _
      $region36: #{tpu_custom_call.1} parent=5 // pred_fallthru
        _
      %p287 = scmp.le.s32.totalorder 1, %s17
      %p288 = scmp.lt.s32.totalorder %s17, 3
      %p289 = pnand %p287, %p288
      %p290 = pneg %p289
      // Predicated region
      $region49: #{tpu_custom_call.1} parent=5 // pred_check
        _
      $region50: #{tpu_custom_call.1} parent=5 // pred_check_branch
        %292 = sbr.rel (%p289) target = $region52
      $region51: #{tpu_custom_call.1} parent=5 // pred_region
        %s293 = ssub.s32 %s17, 1
        %s294 = smul.u32 32, %s22
        %p295 = scmp.lt.s32.totalorder %s294, 63
        %s296 = scalar_select %p295, %s294, 63
        %s297 = smul.addr %s296, 8
        %s298 = scalar_lea.vmem %s0, %s297
        %p299 = pneg %p43
        %p300 = pneg %p40
        %s301 = smul.u32 32, %s22
        %p302 = scmp.lt.s32.totalorder %s301, 63
        %s303 = scalar_select %p302, %s301, 63
        %s304 = smul.addr %s303, 8
        %s305 = scalar_lea.vmem %s1, %s304
        %p306 = pneg %p69
        %p307 = pneg %p66
        %s308 = smul.u32 32, %s22
        %p309 = scmp.lt.s32.totalorder %s308, 63
        %s310 = scalar_select %p309, %s308, 63
        %s311 = smul.addr %s310, 8
        %s312 = scalar_lea.vmem %s2, %s311
        %p313 = pneg %p95
        %p314 = pneg %p92
        %p315 = pneg %p116
        %p316 = pneg %p113
        %p317 = pneg %p137
        %p318 = pneg %p134
        %p319 = pneg %p158
        %p320 = pneg %p155
        %p321 = pneg %p179
        %p322 = pneg %p176
        %p323 = pneg %p200
        %p324 = pneg %p197
        %p325 = pneg %p226
        %p326 = pneg %p223
        %s327 = sand.u32 %s213, 1
        %s328 = scalar_lea.sflag [#allocation3], %s327
        %s329 = sand.u32 %s213, 1
        %s330 = smul.addr %s329, 256
        %s331 = scalar_lea.vmem [#allocation2], %s330
        %s332 = smul.u32 32, %s22
        %p333 = scmp.lt.s32.totalorder %s332, 63
        %s334 = scalar_select %p333, %s332, 63
        %s335 = smul.addr %s334, 8
        %s336 = scalar_lea.vmem %s0, %s335
        %s337 = smul.u32 32, %s22
        %s338 = smul.u32 32, %s22
        %p339 = scmp.lt.s32.totalorder %s338, 63
        %s340 = scalar_select %p339, %s338, 63
        %s341 = smul.addr %s340, 8
        %s342 = scalar_lea.vmem %s1, %s341
        %s343 = smul.u32 32, %s22
        %s344 = smul.u32 32, %s22
        %p345 = scmp.lt.s32.totalorder %s344, 63
        %s346 = scalar_select %p345, %s344, 63
        %s347 = smul.addr %s346, 8
        %s348 = scalar_lea.vmem %s2, %s347
        %s349 = smul.u32 32, %s22
        %s350 = smul.u32 32, %s22
        %v351 = vld [vmem:[%s336] sm:$0xff]
        %v352 = vld [vmem:[%s336 + $0x8] sm:$0xff]
        %v353 = vld [vmem:[%s336 + $0x10] sm:$0xff]
        %v354 = vld [vmem:[%s336 + $0x18] sm:$0xff]
        %v355 = vld [vmem:[%s336 + $0x20] sm:$0xff]
        %v356 = vld [vmem:[%s336 + $0x28] sm:$0xff]
        %v357 = vld [vmem:[%s336 + $0x30] sm:$0xff]
        %v358 = vld [vmem:[%s336 + $0x38] sm:$0xff]
        %v359 = vld [vmem:[%s336 + $0x40] sm:$0xff]
        %v360 = vld [vmem:[%s336 + $0x48] sm:$0xff]
        %v361 = vld [vmem:[%s336 + $0x50] sm:$0xff]
        %v362 = vld [vmem:[%s336 + $0x58] sm:$0xff]
        %v363 = vld [vmem:[%s336 + $0x60] sm:$0xff]
        %v364 = vld [vmem:[%s336 + $0x68] sm:$0xff]
        %v365 = vld [vmem:[%s336 + $0x70] sm:$0xff]
        %v366 = vld [vmem:[%s336 + $0x78] sm:$0xff]
        %v367 = vld [vmem:[%s336 + $0x80] sm:$0xff]
        %v368 = vld [vmem:[%s336 + $0x88] sm:$0xff]
        %v369 = vld [vmem:[%s336 + $0x90] sm:$0xff]
        %v370 = vld [vmem:[%s336 + $0x98] sm:$0xff]
        %v371 = vld [vmem:[%s336 + $0xa0] sm:$0xff]
        %v372 = vld [vmem:[%s336 + $0xa8] sm:$0xff]
        %v373 = vld [vmem:[%s336 + $0xb0] sm:$0xff]
        %v374 = vld [vmem:[%s336 + $0xb8] sm:$0xff]
        %v375 = vld [vmem:[%s336 + $0xc0] sm:$0xff]
        %v376 = vld [vmem:[%s336 + $0xc8] sm:$0xff]
        %v377 = vld [vmem:[%s336 + $0xd0] sm:$0xff]
        %v378 = vld [vmem:[%s336 + $0xd8] sm:$0xff]
        %v379 = vld [vmem:[%s336 + $0xe0] sm:$0xff]
        %v380 = vld [vmem:[%s336 + $0xe8] sm:$0xff]
        %v381 = vld [vmem:[%s336 + $0xf0] sm:$0xff]
        %v382 = vld [vmem:[%s336 + $0xf8] sm:$0xff]
        %v383 = vld [vmem:[%s3] sm:$0xff]
        %v384 = vld [vmem:[%s3 + $0x8] sm:$0xff]
        %v385 = vld [vmem:[%s3 + $0x10] sm:$0xff]
        %v386 = vld [vmem:[%s3 + $0x18] sm:$0xff]
        %v387 = vld [vmem:[%s3 + $0x20] sm:$0xff]
        %v388 = vld [vmem:[%s3 + $0x28] sm:$0xff]
        %v389 = vld [vmem:[%s3 + $0x30] sm:$0xff]
        %v390 = vld [vmem:[%s3 + $0x38] sm:$0xff]
        %v391 = vld [vmem:[%s4] sm:$0x1]
        %v393 = vperm.slane %v391, 0
        %vm395 = vcmask 523264
        %v397 = vsel %vm395, %v351, 0
        %v400 = vsel %vm395, %v352, 0
        %v403 = vsel %vm395, %v353, 0
        %v406 = vsel %vm395, %v354, 0
        %v409 = vsel %vm395, %v355, 0
        %v412 = vsel %vm395, %v356, 0
        %v415 = vsel %vm395, %v357, 0
        %v418 = vsel %vm395, %v358, 0
        %v421 = vsel %vm395, %v359, 0
        %v424 = vsel %vm395, %v360, 0
        %v427 = vsel %vm395, %v361, 0
        %v430 = vsel %vm395, %v362, 0
        %v433 = vsel %vm395, %v363, 0
        %v436 = vsel %vm395, %v364, 0
        %v439 = vsel %vm395, %v365, 0
        %v442 = vsel %vm395, %v366, 0
        %v445 = vsel %vm395, %v367, 0
        %v448 = vsel %vm395, %v368, 0
        %v451 = vsel %vm395, %v369, 0
        %v454 = vsel %vm395, %v370, 0
        %v457 = vsel %vm395, %v371, 0
        %v460 = vsel %vm395, %v372, 0
        %v463 = vsel %vm395, %v373, 0
        %v466 = vsel %vm395, %v374, 0
        %v469 = vsel %vm395, %v375, 0
        %v472 = vsel %vm395, %v376, 0
        %v475 = vsel %vm395, %v377, 0
        %v478 = vsel %vm395, %v378, 0
        %v481 = vsel %vm395, %v379, 0
        %v484 = vsel %vm395, %v380, 0
        %v487 = vsel %vm395, %v381, 0
        %v490 = vsel %vm395, %v382, 0
        %492 = vmatpush.msra.mxu0 0.0
        %493 = vmatpush.msra.mxu0 0.0
        %494 = vmatpush.msra.mxu0 0.0
        %495 = vmatpush.msra.mxu0 0.0
        %496 = vmatpush.msra.mxu0 0.0
        %497 = vmatpush.msra.mxu0 0.0
        %498 = vmatpush.msra.mxu0 0.0
        %499 = vmatpush.msra.mxu0 0.0
        %500 = vmatpush.msra.mxu0 %v390
        %501 = vmatpush.msra.mxu0 %v389
        %502 = vmatpush.msra.mxu0 %v388
        %503 = vmatpush.msra.mxu0 %v387
        %504 = vmatpush.msra.mxu0 %v386
        %505 = vmatpush.msra.mxu0 %v385
        %506 = vmatpush.msra.mxu0 %v384
        %507 = vmatpush.msra.mxu0 %v383
        %508 = vmatmul.f32.gmra.mxu0 %v397
        %v509 = vpop.f32.mrf.mxu0
        %v510 = vadd.f32 %v393, %v509
        %511 = vmatmul.f32.gmra.mxu0 %v400
        %v512 = vpop.f32.mrf.mxu0
        %v513 = vadd.f32 %v393, %v512
        %514 = vmatmul.f32.gmra.mxu0 %v403
        %v515 = vpop.f32.mrf.mxu0
        %v516 = vadd.f32 %v393, %v515
        %517 = vmatmul.f32.gmra.mxu0 %v406
        %v518 = vpop.f32.mrf.mxu0
        %v519 = vadd.f32 %v393, %v518
        %520 = vmatmul.f32.gmra.mxu0 %v409
        %v521 = vpop.f32.mrf.mxu0
        %v522 = vadd.f32 %v393, %v521
        %523 = vmatmul.f32.gmra.mxu0 %v412
        %v524 = vpop.f32.mrf.mxu0
        %v525 = vadd.f32 %v393, %v524
        %526 = vmatmul.f32.gmra.mxu0 %v415
        %v527 = vpop.f32.mrf.mxu0
        %v528 = vadd.f32 %v393, %v527
        %529 = vmatmul.f32.gmra.mxu0 %v418
        %v530 = vpop.f32.mrf.mxu0
        %v531 = vadd.f32 %v393, %v530
        %532 = vmatmul.f32.gmra.mxu0 %v421
        %v533 = vpop.f32.mrf.mxu0
        %v534 = vadd.f32 %v393, %v533
        %535 = vmatmul.f32.gmra.mxu0 %v424
        %v536 = vpop.f32.mrf.mxu0
        %v537 = vadd.f32 %v393, %v536
        %538 = vmatmul.f32.gmra.mxu0 %v427
        %v539 = vpop.f32.mrf.mxu0
        %v540 = vadd.f32 %v393, %v539
        %541 = vmatmul.f32.gmra.mxu0 %v430
        %v542 = vpop.f32.mrf.mxu0
        %v543 = vadd.f32 %v393, %v542
        %544 = vmatmul.f32.gmra.mxu0 %v433
        %v545 = vpop.f32.mrf.mxu0
        %v546 = vadd.f32 %v393, %v545
        %547 = vmatmul.f32.gmra.mxu0 %v436
        %v548 = vpop.f32.mrf.mxu0
        %v549 = vadd.f32 %v393, %v548
        %550 = vmatmul.f32.gmra.mxu0 %v439
        %v551 = vpop.f32.mrf.mxu0
        %v552 = vadd.f32 %v393, %v551
        %553 = vmatmul.f32.gmra.mxu0 %v442
        %v554 = vpop.f32.mrf.mxu0
        %v555 = vadd.f32 %v393, %v554
        %556 = vmatmul.f32.gmra.mxu0 %v445
        %v557 = vpop.f32.mrf.mxu0
        %v558 = vadd.f32 %v393, %v557
        %559 = vmatmul.f32.gmra.mxu0 %v448
        %v560 = vpop.f32.mrf.mxu0
        %v561 = vadd.f32 %v393, %v560
        %562 = vmatmul.f32.gmra.mxu0 %v451
        %v563 = vpop.f32.mrf.mxu0
        %v564 = vadd.f32 %v393, %v563
        %565 = vmatmul.f32.gmra.mxu0 %v454
        %v566 = vpop.f32.mrf.mxu0
        %v567 = vadd.f32 %v393, %v566
        %568 = vmatmul.f32.gmra.mxu0 %v457
        %v569 = vpop.f32.mrf.mxu0
        %v570 = vadd.f32 %v393, %v569
        %571 = vmatmul.f32.gmra.mxu0 %v460
        %v572 = vpop.f32.mrf.mxu0
        %v573 = vadd.f32 %v393, %v572
        %574 = vmatmul.f32.gmra.mxu0 %v463
        %v575 = vpop.f32.mrf.mxu0
        %v576 = vadd.f32 %v393, %v575
        %577 = vmatmul.f32.gmra.mxu0 %v466
        %v578 = vpop.f32.mrf.mxu0
        %v579 = vadd.f32 %v393, %v578
        %580 = vmatmul.f32.gmra.mxu0 %v469
        %v581 = vpop.f32.mrf.mxu0
        %v582 = vadd.f32 %v393, %v581
        %583 = vmatmul.f32.gmra.mxu0 %v472
        %v584 = vpop.f32.mrf.mxu0
        %v585 = vadd.f32 %v393, %v584
        %586 = vmatmul.f32.gmra.mxu0 %v475
        %v587 = vpop.f32.mrf.mxu0
        %v588 = vadd.f32 %v393, %v587
        %589 = vmatmul.f32.gmra.mxu0 %v478
        %v590 = vpop.f32.mrf.mxu0
        %v591 = vadd.f32 %v393, %v590
        %592 = vmatmul.f32.gmra.mxu0 %v481
        %v593 = vpop.f32.mrf.mxu0
        %v594 = vadd.f32 %v393, %v593
        %595 = vmatmul.f32.gmra.mxu0 %v484
        %v596 = vpop.f32.mrf.mxu0
        %v597 = vadd.f32 %v393, %v596
        %598 = vmatmul.f32.gmra.mxu0 %v487
        %v599 = vpop.f32.mrf.mxu0
        %v600 = vadd.f32 %v393, %v599
        %601 = vmatmul.f32.gmra.mxu0 %v490
        %v602 = vpop.f32.mrf.mxu0
        %v603 = vadd.f32 %v393, %v602
        %604 = vdwg.mxu0
        %v605 = vld [vmem:[%s342] sm:$0xff]
        %v606 = vld [vmem:[%s342 + $0x8] sm:$0xff]
        %v607 = vld [vmem:[%s342 + $0x10] sm:$0xff]
        %v608 = vld [vmem:[%s342 + $0x18] sm:$0xff]
        %v609 = vld [vmem:[%s342 + $0x20] sm:$0xff]
        %v610 = vld [vmem:[%s342 + $0x28] sm:$0xff]
        %v611 = vld [vmem:[%s342 + $0x30] sm:$0xff]
        %v612 = vld [vmem:[%s342 + $0x38] sm:$0xff]
        %v613 = vld [vmem:[%s342 + $0x40] sm:$0xff]
        %v614 = vld [vmem:[%s342 + $0x48] sm:$0xff]
        %v615 = vld [vmem:[%s342 + $0x50] sm:$0xff]
        %v616 = vld [vmem:[%s342 + $0x58] sm:$0xff]
        %v617 = vld [vmem:[%s342 + $0x60] sm:$0xff]
        %v618 = vld [vmem:[%s342 + $0x68] sm:$0xff]
        %v619 = vld [vmem:[%s342 + $0x70] sm:$0xff]
        %v620 = vld [vmem:[%s342 + $0x78] sm:$0xff]
        %v621 = vld [vmem:[%s342 + $0x80] sm:$0xff]
        %v622 = vld [vmem:[%s342 + $0x88] sm:$0xff]
        %v623 = vld [vmem:[%s342 + $0x90] sm:$0xff]
        %v624 = vld [vmem:[%s342 + $0x98] sm:$0xff]
        %v625 = vld [vmem:[%s342 + $0xa0] sm:$0xff]
        %v626 = vld [vmem:[%s342 + $0xa8] sm:$0xff]
        %v627 = vld [vmem:[%s342 + $0xb0] sm:$0xff]
        %v628 = vld [vmem:[%s342 + $0xb8] sm:$0xff]
        %v629 = vld [vmem:[%s342 + $0xc0] sm:$0xff]
        %v630 = vld [vmem:[%s342 + $0xc8] sm:$0xff]
        %v631 = vld [vmem:[%s342 + $0xd0] sm:$0xff]
        %v632 = vld [vmem:[%s342 + $0xd8] sm:$0xff]
        %v633 = vld [vmem:[%s342 + $0xe0] sm:$0xff]
        %v634 = vld [vmem:[%s342 + $0xe8] sm:$0xff]
        %v635 = vld [vmem:[%s342 + $0xf0] sm:$0xff]
        %v636 = vld [vmem:[%s342 + $0xf8] sm:$0xff]
        %v637 = vmul.f32 %v510, 0.5
        %v638 = vmul.f32 %v513, 0.5
        %v639 = vmul.f32 %v516, 0.5
        %v640 = vmul.f32 %v519, 0.5
        %v641 = vmul.f32 %v522, 0.5
        %v642 = vmul.f32 %v525, 0.5
        %v643 = vmul.f32 %v528, 0.5
        %v644 = vmul.f32 %v531, 0.5
        %v645 = vmul.f32 %v534, 0.5
        %v646 = vmul.f32 %v537, 0.5
        %v647 = vmul.f32 %v540, 0.5
        %v648 = vmul.f32 %v543, 0.5
        %v649 = vmul.f32 %v546, 0.5
        %v650 = vmul.f32 %v549, 0.5
        %v651 = vmul.f32 %v552, 0.5
        %v652 = vmul.f32 %v555, 0.5
        %v653 = vmul.f32 %v558, 0.5
        %v654 = vmul.f32 %v561, 0.5
        %v655 = vmul.f32 %v564, 0.5
        %v656 = vmul.f32 %v567, 0.5
        %v657 = vmul.f32 %v570, 0.5
        %v658 = vmul.f32 %v573, 0.5
        %v659 = vmul.f32 %v576, 0.5
        %v660 = vmul.f32 %v579, 0.5
        %v661 = vmul.f32 %v582, 0.5
        %v662 = vmul.f32 %v585, 0.5
        %v663 = vmul.f32 %v588, 0.5
        %v664 = vmul.f32 %v591, 0.5
        %v665 = vmul.f32 %v594, 0.5
        %v666 = vmul.f32 %v597, 0.5
        %v667 = vmul.f32 %v600, 0.5
        %v668 = vmul.f32 %v603, 0.5
        %v669 = vmul.f32 %v637, 1.442695
        %v670 = vpow.pop %v669
        %v671 = vmul.f32 %v638, 1.442695
        %v672 = vpow.pop %v671
        %v673 = vmul.f32 %v639, 1.442695
        %v674 = vpow.pop %v673
        %v675 = vmul.f32 %v640, 1.442695
        %v676 = vpow.pop %v675
        %v677 = vmul.f32 %v641, 1.442695
        %v678 = vpow.pop %v677
        %v679 = vmul.f32 %v642, 1.442695
        %v680 = vpow.pop %v679
        %v681 = vmul.f32 %v643, 1.442695
        %v682 = vpow.pop %v681
        %v683 = vmul.f32 %v644, 1.442695
        %v684 = vpow.pop %v683
        %v685 = vmul.f32 %v645, 1.442695
        %v686 = vpow.pop %v685
        %v687 = vmul.f32 %v646, 1.442695
        %v688 = vpow.pop %v687
        %v689 = vmul.f32 %v647, 1.442695
        %v690 = vpow.pop %v689
        %v691 = vmul.f32 %v648, 1.442695
        %v692 = vpow.pop %v691
        %v693 = vmul.f32 %v649, 1.442695
        %v694 = vpow.pop %v693
        %v695 = vmul.f32 %v650, 1.442695
        %v696 = vpow.pop %v695
        %v697 = vmul.f32 %v651, 1.442695
        %v698 = vpow.pop %v697
        %v699 = vmul.f32 %v652, 1.442695
        %v700 = vpow.pop %v699
        %v701 = vmul.f32 %v653, 1.442695
        %v702 = vpow.pop %v701
        %v703 = vmul.f32 %v654, 1.442695
        %v704 = vpow.pop %v703
        %v705 = vmul.f32 %v655, 1.442695
        %v706 = vpow.pop %v705
        %v707 = vmul.f32 %v656, 1.442695
        %v708 = vpow.pop %v707
        %v709 = vmul.f32 %v657, 1.442695
        %v710 = vpow.pop %v709
        %v711 = vmul.f32 %v658, 1.442695
        %v712 = vpow.pop %v711
        %v713 = vmul.f32 %v659, 1.442695
        %v714 = vpow.pop %v713
        %v715 = vmul.f32 %v660, 1.442695
        %v716 = vpow.pop %v715
        %v717 = vmul.f32 %v661, 1.442695
        %v718 = vpow.pop %v717
        %v719 = vmul.f32 %v662, 1.442695
        %v720 = vpow.pop %v719
        %v721 = vmul.f32 %v663, 1.442695
        %v722 = vpow.pop %v721
        %v723 = vmul.f32 %v664, 1.442695
        %v724 = vpow.pop %v723
        %v725 = vmul.f32 %v665, 1.442695
        %v726 = vpow.pop %v725
        %v727 = vmul.f32 %v666, 1.442695
        %v728 = vpow.pop %v727
        %v729 = vmul.f32 %v667, 1.442695
        %v730 = vpow.pop %v729
        %v731 = vmul.f32 %v668, 1.442695
        %v732 = vpow.pop %v731
        %765 = vrot.lane.b32.xlu0 %v670, 96
        %v766 = vpop.permute.xlu0 %765
        %767 = vrot.lane.b32.xlu0 %v672, 96
        %v768 = vpop.permute.xlu0 %767
        %769 = vrot.lane.b32.xlu0 %v674, 96
        %v770 = vpop.permute.xlu0 %769
        %771 = vrot.lane.b32.xlu0 %v676, 96
        %v772 = vpop.permute.xlu0 %771
        %773 = vrot.lane.b32.xlu0 %v678, 96
        %v774 = vpop.permute.xlu0 %773
        %775 = vrot.lane.b32.xlu0 %v680, 96
        %v776 = vpop.permute.xlu0 %775
        %777 = vrot.lane.b32.xlu0 %v682, 96
        %v778 = vpop.permute.xlu0 %777
        %779 = vrot.lane.b32.xlu0 %v684, 96
        %v780 = vpop.permute.xlu0 %779
        %781 = vrot.lane.b32.xlu0 %v686, 96
        %v782 = vpop.permute.xlu0 %781
        %783 = vrot.lane.b32.xlu0 %v688, 96
        %v784 = vpop.permute.xlu0 %783
        %785 = vrot.lane.b32.xlu0 %v690, 96
        %v786 = vpop.permute.xlu0 %785
        %787 = vrot.lane.b32.xlu0 %v692, 96
        %v788 = vpop.permute.xlu0 %787
        %789 = vrot.lane.b32.xlu0 %v694, 96
        %v790 = vpop.permute.xlu0 %789
        %791 = vrot.lane.b32.xlu0 %v696, 96
        %v792 = vpop.permute.xlu0 %791
        %793 = vrot.lane.b32.xlu0 %v698, 96
        %v794 = vpop.permute.xlu0 %793
        %795 = vrot.lane.b32.xlu0 %v700, 96
        %v796 = vpop.permute.xlu0 %795
        %797 = vrot.lane.b32.xlu0 %v702, 96
        %v798 = vpop.permute.xlu0 %797
        %799 = vrot.lane.b32.xlu0 %v704, 96
        %v800 = vpop.permute.xlu0 %799
        %801 = vrot.lane.b32.xlu0 %v706, 96
        %v802 = vpop.permute.xlu0 %801
        %803 = vrot.lane.b32.xlu0 %v708, 96
        %v804 = vpop.permute.xlu0 %803
        %805 = vrot.lane.b32.xlu0 %v710, 96
        %v806 = vpop.permute.xlu0 %805
        %807 = vrot.lane.b32.xlu0 %v712, 96
        %v808 = vpop.permute.xlu0 %807
        %809 = vrot.lane.b32.xlu0 %v714, 96
        %v810 = vpop.permute.xlu0 %809
        %811 = vrot.lane.b32.xlu0 %v716, 96
        %v812 = vpop.permute.xlu0 %811
        %813 = vrot.lane.b32.xlu0 %v718, 96
        %v814 = vpop.permute.xlu0 %813
        %815 = vrot.lane.b32.xlu0 %v720, 96
        %v816 = vpop.permute.xlu0 %815
        %817 = vrot.lane.b32.xlu0 %v722, 96
        %v818 = vpop.permute.xlu0 %817
        %819 = vrot.lane.b32.xlu0 %v724, 96
        %v820 = vpop.permute.xlu0 %819
        %821 = vrot.lane.b32.xlu0 %v726, 96
        %v822 = vpop.permute.xlu0 %821
        %823 = vrot.lane.b32.xlu0 %v728, 96
        %v824 = vpop.permute.xlu0 %823
        %825 = vrot.lane.b32.xlu0 %v730, 96
        %v826 = vpop.permute.xlu0 %825
        %827 = vrot.lane.b32.xlu0 %v732, 96
        %v828 = vpop.permute.xlu0 %827
        %v861 = vmul.f32 %v605, %v766
        %v862 = vmul.f32 %v606, %v768
        %v863 = vmul.f32 %v607, %v770
        %v864 = vmul.f32 %v608, %v772
        %v865 = vmul.f32 %v609, %v774
        %v866 = vmul.f32 %v610, %v776
        %v867 = vmul.f32 %v611, %v778
        %v868 = vmul.f32 %v612, %v780
        %v869 = vmul.f32 %v613, %v782
        %v870 = vmul.f32 %v614, %v784
        %v871 = vmul.f32 %v615, %v786
        %v872 = vmul.f32 %v616, %v788
        %v873 = vmul.f32 %v617, %v790
        %v874 = vmul.f32 %v618, %v792
        %v875 = vmul.f32 %v619, %v794
        %v876 = vmul.f32 %v620, %v796
        %v877 = vmul.f32 %v621, %v798
        %v878 = vmul.f32 %v622, %v800
        %v879 = vmul.f32 %v623, %v802
        %v880 = vmul.f32 %v624, %v804
        %v881 = vmul.f32 %v625, %v806
        %v882 = vmul.f32 %v626, %v808
        %v883 = vmul.f32 %v627, %v810
        %v884 = vmul.f32 %v628, %v812
        %v885 = vmul.f32 %v629, %v814
        %v886 = vmul.f32 %v630, %v816
        %v887 = vmul.f32 %v631, %v818
        %v888 = vmul.f32 %v632, %v820
        %v889 = vmul.f32 %v633, %v822
        %v890 = vmul.f32 %v634, %v824
        %v891 = vmul.f32 %v635, %v826
        %v892 = vmul.f32 %v636, %v828
        %v893 = vadd.f32 %v861, %v510
        %v894 = vadd.f32 %v862, %v513
        %v895 = vadd.f32 %v863, %v516
        %v896 = vadd.f32 %v864, %v519
        %v897 = vadd.f32 %v865, %v522
        %v898 = vadd.f32 %v866, %v525
        %v899 = vadd.f32 %v867, %v528
        %v900 = vadd.f32 %v868, %v531
        %v901 = vadd.f32 %v869, %v534
        %v902 = vadd.f32 %v870, %v537
        %v903 = vadd.f32 %v871, %v540
        %v904 = vadd.f32 %v872, %v543
        %v905 = vadd.f32 %v873, %v546
        %v906 = vadd.f32 %v874, %v549
        %v907 = vadd.f32 %v875, %v552
        %v908 = vadd.f32 %v876, %v555
        %v909 = vadd.f32 %v877, %v558
        %v910 = vadd.f32 %v878, %v561
        %v911 = vadd.f32 %v879, %v564
        %v912 = vadd.f32 %v880, %v567
        %v913 = vadd.f32 %v881, %v570
        %v914 = vadd.f32 %v882, %v573
        %v915 = vadd.f32 %v883, %v576
        %v916 = vadd.f32 %v884, %v579
        %v917 = vadd.f32 %v885, %v582
        %v918 = vadd.f32 %v886, %v585
        %v919 = vadd.f32 %v887, %v588
        %v920 = vadd.f32 %v888, %v591
        %v921 = vadd.f32 %v889, %v594
        %v922 = vadd.f32 %v890, %v597
        %v923 = vadd.f32 %v891, %v600
        %v924 = vadd.f32 %v892, %v603
        %v925 = vld [vmem:[%s5] sm:$0xff]
        %v926 = vld [vmem:[%s5 + $0x8] sm:$0xff]
        %v927 = vld [vmem:[%s5 + $0x10] sm:$0xff]
        %v928 = vld [vmem:[%s5 + $0x18] sm:$0xff]
        %v929 = vld [vmem:[%s348] sm:$0xff]
        %v930 = vld [vmem:[%s348 + $0x8] sm:$0xff]
        %v931 = vld [vmem:[%s348 + $0x10] sm:$0xff]
        %v932 = vld [vmem:[%s348 + $0x18] sm:$0xff]
        %v933 = vld [vmem:[%s348 + $0x20] sm:$0xff]
        %v934 = vld [vmem:[%s348 + $0x28] sm:$0xff]
        %v935 = vld [vmem:[%s348 + $0x30] sm:$0xff]
        %v936 = vld [vmem:[%s348 + $0x38] sm:$0xff]
        %v937 = vld [vmem:[%s348 + $0x40] sm:$0xff]
        %v938 = vld [vmem:[%s348 + $0x48] sm:$0xff]
        %v939 = vld [vmem:[%s348 + $0x50] sm:$0xff]
        %v940 = vld [vmem:[%s348 + $0x58] sm:$0xff]
        %v941 = vld [vmem:[%s348 + $0x60] sm:$0xff]
        %v942 = vld [vmem:[%s348 + $0x68] sm:$0xff]
        %v943 = vld [vmem:[%s348 + $0x70] sm:$0xff]
        %v944 = vld [vmem:[%s348 + $0x78] sm:$0xff]
        %v945 = vld [vmem:[%s348 + $0x80] sm:$0xff]
        %v946 = vld [vmem:[%s348 + $0x88] sm:$0xff]
        %v947 = vld [vmem:[%s348 + $0x90] sm:$0xff]
        %v948 = vld [vmem:[%s348 + $0x98] sm:$0xff]
        %v949 = vld [vmem:[%s348 + $0xa0] sm:$0xff]
        %v950 = vld [vmem:[%s348 + $0xa8] sm:$0xff]
        %v951 = vld [vmem:[%s348 + $0xb0] sm:$0xff]
        %v952 = vld [vmem:[%s348 + $0xb8] sm:$0xff]
        %v953 = vld [vmem:[%s348 + $0xc0] sm:$0xff]
        %v954 = vld [vmem:[%s348 + $0xc8] sm:$0xff]
        %v955 = vld [vmem:[%s348 + $0xd0] sm:$0xff]
        %v956 = vld [vmem:[%s348 + $0xd8] sm:$0xff]
        %v957 = vld [vmem:[%s348 + $0xe0] sm:$0xff]
        %v958 = vld [vmem:[%s348 + $0xe8] sm:$0xff]
        %v959 = vld [vmem:[%s348 + $0xf0] sm:$0xff]
        %v960 = vld [vmem:[%s348 + $0xf8] sm:$0xff]
        %v961 = vld [vmem:[%s6] sm:$0x1]
        %963 = vset.pattern.permute.xlu0 0
        %964 = vperm.xlu0 %963, %v929
        %v965 = vpop.permute.xlu0 %964
        %968 = vset.pattern.permute.xlu0 0
        %969 = vperm.xlu0 %968, %v930
        %v970 = vpop.permute.xlu0 %969
        %973 = vset.pattern.permute.xlu0 0
        %974 = vperm.xlu0 %973, %v931
        %v975 = vpop.permute.xlu0 %974
        %978 = vset.pattern.permute.xlu0 0
        %979 = vperm.xlu0 %978, %v932
        %v980 = vpop.permute.xlu0 %979
        %983 = vset.pattern.permute.xlu0 0
        %984 = vperm.xlu0 %983, %v933
        %v985 = vpop.permute.xlu0 %984
        %988 = vset.pattern.permute.xlu0 0
        %989 = vperm.xlu0 %988, %v934
        %v990 = vpop.permute.xlu0 %989
        %993 = vset.pattern.permute.xlu0 0
        %994 = vperm.xlu0 %993, %v935
        %v995 = vpop.permute.xlu0 %994
        %998 = vset.pattern.permute.xlu0 0
        %999 = vperm.xlu0 %998, %v936
        %v1000 = vpop.permute.xlu0 %999
        %1003 = vset.pattern.permute.xlu0 0
        %1004 = vperm.xlu0 %1003, %v937
        %v1005 = vpop.permute.xlu0 %1004
        %1008 = vset.pattern.permute.xlu0 0
        %1009 = vperm.xlu0 %1008, %v938
        %v1010 = vpop.permute.xlu0 %1009
        %1013 = vset.pattern.permute.xlu0 0
        %1014 = vperm.xlu0 %1013, %v939
        %v1015 = vpop.permute.xlu0 %1014
        %1018 = vset.pattern.permute.xlu0 0
        %1019 = vperm.xlu0 %1018, %v940
        %v1020 = vpop.permute.xlu0 %1019
        %1023 = vset.pattern.permute.xlu0 0
        %1024 = vperm.xlu0 %1023, %v941
        %v1025 = vpop.permute.xlu0 %1024
        %1028 = vset.pattern.permute.xlu0 0
        %1029 = vperm.xlu0 %1028, %v942
        %v1030 = vpop.permute.xlu0 %1029
        %1033 = vset.pattern.permute.xlu0 0
        %1034 = vperm.xlu0 %1033, %v943
        %v1035 = vpop.permute.xlu0 %1034
        %1038 = vset.pattern.permute.xlu0 0
        %1039 = vperm.xlu0 %1038, %v944
        %v1040 = vpop.permute.xlu0 %1039
        %1043 = vset.pattern.permute.xlu0 0
        %1044 = vperm.xlu0 %1043, %v945
        %v1045 = vpop.permute.xlu0 %1044
        %1048 = vset.pattern.permute.xlu0 0
        %1049 = vperm.xlu0 %1048, %v946
        %v1050 = vpop.permute.xlu0 %1049
        %1053 = vset.pattern.permute.xlu0 0
        %1054 = vperm.xlu0 %1053, %v947
        %v1055 = vpop.permute.xlu0 %1054
        %1058 = vset.pattern.permute.xlu0 0
        %1059 = vperm.xlu0 %1058, %v948
        %v1060 = vpop.permute.xlu0 %1059
        %1063 = vset.pattern.permute.xlu0 0
        %1064 = vperm.xlu0 %1063, %v949
        %v1065 = vpop.permute.xlu0 %1064
        %1068 = vset.pattern.permute.xlu0 0
        %1069 = vperm.xlu0 %1068, %v950
        %v1070 = vpop.permute.xlu0 %1069
        %1073 = vset.pattern.permute.xlu0 0
        %1074 = vperm.xlu0 %1073, %v951
        %v1075 = vpop.permute.xlu0 %1074
        %1078 = vset.pattern.permute.xlu0 0
        %1079 = vperm.xlu0 %1078, %v952
        %v1080 = vpop.permute.xlu0 %1079
        %1083 = vset.pattern.permute.xlu0 0
        %1084 = vperm.xlu0 %1083, %v953
        %v1085 = vpop.permute.xlu0 %1084
        %1088 = vset.pattern.permute.xlu0 0
        %1089 = vperm.xlu0 %1088, %v954
        %v1090 = vpop.permute.xlu0 %1089
        %1093 = vset.pattern.permute.xlu0 0
        %1094 = vperm.xlu0 %1093, %v955
        %v1095 = vpop.permute.xlu0 %1094
        %1098 = vset.pattern.permute.xlu0 0
        %1099 = vperm.xlu0 %1098, %v956
        %v1100 = vpop.permute.xlu0 %1099
        %1103 = vset.pattern.permute.xlu0 0
        %1104 = vperm.xlu0 %1103, %v957
        %v1105 = vpop.permute.xlu0 %1104
        %1108 = vset.pattern.permute.xlu0 0
        %1109 = vperm.xlu0 %1108, %v958
        %v1110 = vpop.permute.xlu0 %1109
        %1113 = vset.pattern.permute.xlu0 0
        %1114 = vperm.xlu0 %1113, %v959
        %v1115 = vpop.permute.xlu0 %1114
        %1118 = vset.pattern.permute.xlu0 0
        %1119 = vperm.xlu0 %1118, %v960
        %v1120 = vpop.permute.xlu0 %1119
        %v1123 = vperm.slane %v961, 0
        %v1125 = vmul.f32 %v965, %v1123
        %v1126 = vmul.f32 %v970, %v1123
        %v1127 = vmul.f32 %v975, %v1123
        %v1128 = vmul.f32 %v980, %v1123
        %v1129 = vmul.f32 %v985, %v1123
        %v1130 = vmul.f32 %v990, %v1123
        %v1131 = vmul.f32 %v995, %v1123
        %v1132 = vmul.f32 %v1000, %v1123
        %v1133 = vmul.f32 %v1005, %v1123
        %v1134 = vmul.f32 %v1010, %v1123
        %v1135 = vmul.f32 %v1015, %v1123
        %v1136 = vmul.f32 %v1020, %v1123
        %v1137 = vmul.f32 %v1025, %v1123
        %v1138 = vmul.f32 %v1030, %v1123
        %v1139 = vmul.f32 %v1035, %v1123
        %v1140 = vmul.f32 %v1040, %v1123
        %v1141 = vmul.f32 %v1045, %v1123
        %v1142 = vmul.f32 %v1050, %v1123
        %v1143 = vmul.f32 %v1055, %v1123
        %v1144 = vmul.f32 %v1060, %v1123
        %v1145 = vmul.f32 %v1065, %v1123
        %v1146 = vmul.f32 %v1070, %v1123
        %v1147 = vmul.f32 %v1075, %v1123
        %v1148 = vmul.f32 %v1080, %v1123
        %v1149 = vmul.f32 %v1085, %v1123
        %v1150 = vmul.f32 %v1090, %v1123
        %v1151 = vmul.f32 %v1095, %v1123
        %v1152 = vmul.f32 %v1100, %v1123
        %v1153 = vmul.f32 %v1105, %v1123
        %v1154 = vmul.f32 %v1110, %v1123
        %v1155 = vmul.f32 %v1115, %v1123
        %v1156 = vmul.f32 %v1120, %v1123
        %vm1157 = vcmask 261120
        %v1159 = vsel %vm1157, %v893, 0
        %v1162 = vsel %vm1157, %v894, 0
        %v1165 = vsel %vm1157, %v895, 0
        %v1168 = vsel %vm1157, %v896, 0
        %v1171 = vsel %vm1157, %v897, 0
        %v1174 = vsel %vm1157, %v898, 0
        %v1177 = vsel %vm1157, %v899, 0
        %v1180 = vsel %vm1157, %v900, 0
        %v1183 = vsel %vm1157, %v901, 0
        %v1186 = vsel %vm1157, %v902, 0
        %v1189 = vsel %vm1157, %v903, 0
        %v1192 = vsel %vm1157, %v904, 0
        %v1195 = vsel %vm1157, %v905, 0
        %v1198 = vsel %vm1157, %v906, 0
        %v1201 = vsel %vm1157, %v907, 0
        %v1204 = vsel %vm1157, %v908, 0
        %v1207 = vsel %vm1157, %v909, 0
        %v1210 = vsel %vm1157, %v910, 0
        %v1213 = vsel %vm1157, %v911, 0
        %v1216 = vsel %vm1157, %v912, 0
        %v1219 = vsel %vm1157, %v913, 0
        %v1222 = vsel %vm1157, %v914, 0
        %v1225 = vsel %vm1157, %v915, 0
        %v1228 = vsel %vm1157, %v916, 0
        %v1231 = vsel %vm1157, %v917, 0
        %v1234 = vsel %vm1157, %v918, 0
        %v1237 = vsel %vm1157, %v919, 0
        %v1240 = vsel %vm1157, %v920, 0
        %v1243 = vsel %vm1157, %v921, 0
        %v1246 = vsel %vm1157, %v922, 0
        %v1249 = vsel %vm1157, %v923, 0
        %v1252 = vsel %vm1157, %v924, 0
        %1254 = vmatpush.msra.mxu0 0.0
        %1255 = vmatpush.msra.mxu0 0.0
        %1256 = vmatpush.msra.mxu0 0.0
        %1257 = vmatpush.msra.mxu0 0.0
        %1258 = vmatpush.msra.mxu0 0.0
        %1259 = vmatpush.msra.mxu0 0.0
        %1260 = vmatpush.msra.mxu0 0.0
        %1261 = vmatpush.msra.mxu0 0.0
        %1262 = vmatpush.msra.mxu0 0.0
        %1263 = vmatpush.msra.mxu0 0.0
        %1264 = vmatpush.msra.mxu0 0.0
        %1265 = vmatpush.msra.mxu0 0.0
        %1266 = vmatpush.msra.mxu0 %v928
        %1267 = vmatpush.msra.mxu0 %v927
        %1268 = vmatpush.msra.mxu0 %v926
        %1269 = vmatpush.msra.mxu0 %v925
        %1270 = vmatmul.f32.gmra.mxu0 %v1159
        %v1271 = vpop.f32.mrf.mxu0
        %v1272 = vadd.f32 %v1125, %v1271
        %1273 = vmatmul.f32.gmra.mxu0 %v1162
        %v1274 = vpop.f32.mrf.mxu0
        %v1275 = vadd.f32 %v1126, %v1274
        %1276 = vmatmul.f32.gmra.mxu0 %v1165
        %v1277 = vpop.f32.mrf.mxu0
        %v1278 = vadd.f32 %v1127, %v1277
        %1279 = vmatmul.f32.gmra.mxu0 %v1168
        %v1280 = vpop.f32.mrf.mxu0
        %v1281 = vadd.f32 %v1128, %v1280
        %1282 = vmatmul.f32.gmra.mxu0 %v1171
        %v1283 = vpop.f32.mrf.mxu0
        %v1284 = vadd.f32 %v1129, %v1283
        %1285 = vmatmul.f32.gmra.mxu0 %v1174
        %v1286 = vpop.f32.mrf.mxu0
        %v1287 = vadd.f32 %v1130, %v1286
        %1288 = vmatmul.f32.gmra.mxu0 %v1177
        %v1289 = vpop.f32.mrf.mxu0
        %v1290 = vadd.f32 %v1131, %v1289
        %1291 = vmatmul.f32.gmra.mxu0 %v1180
        %v1292 = vpop.f32.mrf.mxu0
        %v1293 = vadd.f32 %v1132, %v1292
        %1294 = vmatmul.f32.gmra.mxu0 %v1183
        %v1295 = vpop.f32.mrf.mxu0
        %v1296 = vadd.f32 %v1133, %v1295
        %1297 = vmatmul.f32.gmra.mxu0 %v1186
        %v1298 = vpop.f32.mrf.mxu0
        %v1299 = vadd.f32 %v1134, %v1298
        %1300 = vmatmul.f32.gmra.mxu0 %v1189
        %v1301 = vpop.f32.mrf.mxu0
        %v1302 = vadd.f32 %v1135, %v1301
        %1303 = vmatmul.f32.gmra.mxu0 %v1192
        %v1304 = vpop.f32.mrf.mxu0
        %v1305 = vadd.f32 %v1136, %v1304
        %1306 = vmatmul.f32.gmra.mxu0 %v1195
        %v1307 = vpop.f32.mrf.mxu0
        %v1308 = vadd.f32 %v1137, %v1307
        %1309 = vmatmul.f32.gmra.mxu0 %v1198
        %v1310 = vpop.f32.mrf.mxu0
        %v1311 = vadd.f32 %v1138, %v1310
        %1312 = vmatmul.f32.gmra.mxu0 %v1201
        %v1313 = vpop.f32.mrf.mxu0
        %v1314 = vadd.f32 %v1139, %v1313
        %1315 = vmatmul.f32.gmra.mxu0 %v1204
        %v1316 = vpop.f32.mrf.mxu0
        %v1317 = vadd.f32 %v1140, %v1316
        %1318 = vmatmul.f32.gmra.mxu0 %v1207
        %v1319 = vpop.f32.mrf.mxu0
        %v1320 = vadd.f32 %v1141, %v1319
        %1321 = vmatmul.f32.gmra.mxu0 %v1210
        %v1322 = vpop.f32.mrf.mxu0
        %v1323 = vadd.f32 %v1142, %v1322
        %1324 = vmatmul.f32.gmra.mxu0 %v1213
        %v1325 = vpop.f32.mrf.mxu0
        %v1326 = vadd.f32 %v1143, %v1325
        %1327 = vmatmul.f32.gmra.mxu0 %v1216
        %v1328 = vpop.f32.mrf.mxu0
        %v1329 = vadd.f32 %v1144, %v1328
        %1330 = vmatmul.f32.gmra.mxu0 %v1219
        %v1331 = vpop.f32.mrf.mxu0
        %v1332 = vadd.f32 %v1145, %v1331
        %1333 = vmatmul.f32.gmra.mxu0 %v1222
        %v1334 = vpop.f32.mrf.mxu0
        %v1335 = vadd.f32 %v1146, %v1334
        %1336 = vmatmul.f32.gmra.mxu0 %v1225
        %v1337 = vpop.f32.mrf.mxu0
        %v1338 = vadd.f32 %v1147, %v1337
        %1339 = vmatmul.f32.gmra.mxu0 %v1228
        %v1340 = vpop.f32.mrf.mxu0
        %v1341 = vadd.f32 %v1148, %v1340
        %1342 = vmatmul.f32.gmra.mxu0 %v1231
        %v1343 = vpop.f32.mrf.mxu0
        %v1344 = vadd.f32 %v1149, %v1343
        %1345 = vmatmul.f32.gmra.mxu0 %v1234
        %v1346 = vpop.f32.mrf.mxu0
        %v1347 = vadd.f32 %v1150, %v1346
        %1348 = vmatmul.f32.gmra.mxu0 %v1237
        %v1349 = vpop.f32.mrf.mxu0
        %v1350 = vadd.f32 %v1151, %v1349
        %1351 = vmatmul.f32.gmra.mxu0 %v1240
        %v1352 = vpop.f32.mrf.mxu0
        %v1353 = vadd.f32 %v1152, %v1352
        %1354 = vmatmul.f32.gmra.mxu0 %v1243
        %v1355 = vpop.f32.mrf.mxu0
        %v1356 = vadd.f32 %v1153, %v1355
        %1357 = vmatmul.f32.gmra.mxu0 %v1246
        %v1358 = vpop.f32.mrf.mxu0
        %v1359 = vadd.f32 %v1154, %v1358
        %1360 = vmatmul.f32.gmra.mxu0 %v1249
        %v1361 = vpop.f32.mrf.mxu0
        %v1362 = vadd.f32 %v1155, %v1361
        %1363 = vmatmul.f32.gmra.mxu0 %v1252
        %v1364 = vpop.f32.mrf.mxu0
        %v1365 = vadd.f32 %v1156, %v1364
        %1366 = vdwg.mxu0
        %v1367 = vld [vmem:[%s7] sm:$0x1]
        %v1369 = vperm.slane %v1367, 0
        %v1371 = vadd.f32 %v1272, %v1369
        %v1372 = vadd.f32 %v1275, %v1369
        %v1373 = vadd.f32 %v1278, %v1369
        %v1374 = vadd.f32 %v1281, %v1369
        %v1375 = vadd.f32 %v1284, %v1369
        %v1376 = vadd.f32 %v1287, %v1369
        %v1377 = vadd.f32 %v1290, %v1369
        %v1378 = vadd.f32 %v1293, %v1369
        %v1379 = vadd.f32 %v1296, %v1369
        %v1380 = vadd.f32 %v1299, %v1369
        %v1381 = vadd.f32 %v1302, %v1369
        %v1382 = vadd.f32 %v1305, %v1369
        %v1383 = vadd.f32 %v1308, %v1369
        %v1384 = vadd.f32 %v1311, %v1369
        %v1385 = vadd.f32 %v1314, %v1369
        %v1386 = vadd.f32 %v1317, %v1369
        %v1387 = vadd.f32 %v1320, %v1369
        %v1388 = vadd.f32 %v1323, %v1369
        %v1389 = vadd.f32 %v1326, %v1369
        %v1390 = vadd.f32 %v1329, %v1369
        %v1391 = vadd.f32 %v1332, %v1369
        %v1392 = vadd.f32 %v1335, %v1369
        %v1393 = vadd.f32 %v1338, %v1369
        %v1394 = vadd.f32 %v1341, %v1369
        %v1395 = vadd.f32 %v1344, %v1369
        %v1396 = vadd.f32 %v1347, %v1369
        %v1397 = vadd.f32 %v1350, %v1369
        %v1398 = vadd.f32 %v1353, %v1369
        %v1399 = vadd.f32 %v1356, %v1369
        %v1400 = vadd.f32 %v1359, %v1369
        %v1401 = vadd.f32 %v1362, %v1369
        %v1402 = vadd.f32 %v1365, %v1369
        %1403 = vst.msk [vmem:[%s331] sm:$0xff] %vm395, %v1371
        %1404 = vst.msk [vmem:[%s331 + $0x8] sm:$0xff] %vm395, %v1372
        %1405 = vst.msk [vmem:[%s331 + $0x10] sm:$0xff] %vm395, %v1373
        %1406 = vst.msk [vmem:[%s331 + $0x18] sm:$0xff] %vm395, %v1374
        %1407 = vst.msk [vmem:[%s331 + $0x20] sm:$0xff] %vm395, %v1375
        %1408 = vst.msk [vmem:[%s331 + $0x28] sm:$0xff] %vm395, %v1376
        %1409 = vst.msk [vmem:[%s331 + $0x30] sm:$0xff] %vm395, %v1377
        %1410 = vst.msk [vmem:[%s331 + $0x38] sm:$0xff] %vm395, %v1378
        %1411 = vst.msk [vmem:[%s331 + $0x40] sm:$0xff] %vm395, %v1379
        %1412 = vst.msk [vmem:[%s331 + $0x48] sm:$0xff] %vm395, %v1380
        %1413 = vst.msk [vmem:[%s331 + $0x50] sm:$0xff] %vm395, %v1381
        %1414 = vst.msk [vmem:[%s331 + $0x58] sm:$0xff] %vm395, %v1382
        %1415 = vst.msk [vmem:[%s331 + $0x60] sm:$0xff] %vm395, %v1383
        %1416 = vst.msk [vmem:[%s331 + $0x68] sm:$0xff] %vm395, %v1384
        %1417 = vst.msk [vmem:[%s331 + $0x70] sm:$0xff] %vm395, %v1385
        %1418 = vst.msk [vmem:[%s331 + $0x78] sm:$0xff] %vm395, %v1386
        %1419 = vst.msk [vmem:[%s331 + $0x80] sm:$0xff] %vm395, %v1387
        %1420 = vst.msk [vmem:[%s331 + $0x88] sm:$0xff] %vm395, %v1388
        %1421 = vst.msk [vmem:[%s331 + $0x90] sm:$0xff] %vm395, %v1389
        %1422 = vst.msk [vmem:[%s331 + $0x98] sm:$0xff] %vm395, %v1390
        %1423 = vst.msk [vmem:[%s331 + $0xa0] sm:$0xff] %vm395, %v1391
        %1424 = vst.msk [vmem:[%s331 + $0xa8] sm:$0xff] %vm395, %v1392
        %1425 = vst.msk [vmem:[%s331 + $0xb0] sm:$0xff] %vm395, %v1393
        %1426 = vst.msk [vmem:[%s331 + $0xb8] sm:$0xff] %vm395, %v1394
        %1427 = vst.msk [vmem:[%s331 + $0xc0] sm:$0xff] %vm395, %v1395
        %1428 = vst.msk [vmem:[%s331 + $0xc8] sm:$0xff] %vm395, %v1396
        %1429 = vst.msk [vmem:[%s331 + $0xd0] sm:$0xff] %vm395, %v1397
        %1430 = vst.msk [vmem:[%s331 + $0xd8] sm:$0xff] %vm395, %v1398
        %1431 = vst.msk [vmem:[%s331 + $0xe0] sm:$0xff] %vm395, %v1399
        %1432 = vst.msk [vmem:[%s331 + $0xe8] sm:$0xff] %vm395, %v1400
        %1433 = vst.msk [vmem:[%s331 + $0xf0] sm:$0xff] %vm395, %v1401
        %1434 = vst.msk [vmem:[%s331 + $0xf8] sm:$0xff] %vm395, %v1402
        %1467 = vrot.lane.b32.xlu0 %v510, 64
        %v1468 = vpop.permute.xlu0 %1467
        %1469 = vrot.lane.b32.xlu0 %v513, 64
        %v1470 = vpop.permute.xlu0 %1469
        %1471 = vrot.lane.b32.xlu0 %v516, 64
        %v1472 = vpop.permute.xlu0 %1471
        %1473 = vrot.lane.b32.xlu0 %v519, 64
        %v1474 = vpop.permute.xlu0 %1473
        %1475 = vrot.lane.b32.xlu0 %v522, 64
        %v1476 = vpop.permute.xlu0 %1475
        %1477 = vrot.lane.b32.xlu0 %v525, 64
        %v1478 = vpop.permute.xlu0 %1477
        %1479 = vrot.lane.b32.xlu0 %v528, 64
        %v1480 = vpop.permute.xlu0 %1479
        %1481 = vrot.lane.b32.xlu0 %v531, 64
        %v1482 = vpop.permute.xlu0 %1481
        %1483 = vrot.lane.b32.xlu0 %v534, 64
        %v1484 = vpop.permute.xlu0 %1483
        %1485 = vrot.lane.b32.xlu0 %v537, 64
        %v1486 = vpop.permute.xlu0 %1485
        %1487 = vrot.lane.b32.xlu0 %v540, 64
        %v1488 = vpop.permute.xlu0 %1487
        %1489 = vrot.lane.b32.xlu0 %v543, 64
        %v1490 = vpop.permute.xlu0 %1489
        %1491 = vrot.lane.b32.xlu0 %v546, 64
        %v1492 = vpop.permute.xlu0 %1491
        %1493 = vrot.lane.b32.xlu0 %v549, 64
        %v1494 = vpop.permute.xlu0 %1493
        %1495 = vrot.lane.b32.xlu0 %v552, 64
        %v1496 = vpop.permute.xlu0 %1495
        %1497 = vrot.lane.b32.xlu0 %v555, 64
        %v1498 = vpop.permute.xlu0 %1497
        %1499 = vrot.lane.b32.xlu0 %v558, 64
        %v1500 = vpop.permute.xlu0 %1499
        %1501 = vrot.lane.b32.xlu0 %v561, 64
        %v1502 = vpop.permute.xlu0 %1501
        %1503 = vrot.lane.b32.xlu0 %v564, 64
        %v1504 = vpop.permute.xlu0 %1503
        %1505 = vrot.lane.b32.xlu0 %v567, 64
        %v1506 = vpop.permute.xlu0 %1505
        %1507 = vrot.lane.b32.xlu0 %v570, 64
        %v1508 = vpop.permute.xlu0 %1507
        %1509 = vrot.lane.b32.xlu0 %v573, 64
        %v1510 = vpop.permute.xlu0 %1509
        %1511 = vrot.lane.b32.xlu0 %v576, 64
        %v1512 = vpop.permute.xlu0 %1511
        %1513 = vrot.lane.b32.xlu0 %v579, 64
        %v1514 = vpop.permute.xlu0 %1513
        %1515 = vrot.lane.b32.xlu0 %v582, 64
        %v1516 = vpop.permute.xlu0 %1515
        %1517 = vrot.lane.b32.xlu0 %v585, 64
        %v1518 = vpop.permute.xlu0 %1517
        %1519 = vrot.lane.b32.xlu0 %v588, 64
        %v1520 = vpop.permute.xlu0 %1519
        %1521 = vrot.lane.b32.xlu0 %v591, 64
        %v1522 = vpop.permute.xlu0 %1521
        %1523 = vrot.lane.b32.xlu0 %v594, 64
        %v1524 = vpop.permute.xlu0 %1523
        %1525 = vrot.lane.b32.xlu0 %v597, 64
        %v1526 = vpop.permute.xlu0 %1525
        %1527 = vrot.lane.b32.xlu0 %v600, 64
        %v1528 = vpop.permute.xlu0 %1527
        %1529 = vrot.lane.b32.xlu0 %v603, 64
        %v1530 = vpop.permute.xlu0 %1529
        %vm1563 = vcmask 1048064
        %1564 = vst.msk [vmem:[%s331] sm:$0xff] %vm1563, %v1468
        %1565 = vst.msk [vmem:[%s331 + $0x8] sm:$0xff] %vm1563, %v1470
        %1566 = vst.msk [vmem:[%s331 + $0x10] sm:$0xff] %vm1563, %v1472
        %1567 = vst.msk [vmem:[%s331 + $0x18] sm:$0xff] %vm1563, %v1474
        %1568 = vst.msk [vmem:[%s331 + $0x20] sm:$0xff] %vm1563, %v1476
        %1569 = vst.msk [vmem:[%s331 + $0x28] sm:$0xff] %vm1563, %v1478
        %1570 = vst.msk [vmem:[%s331 + $0x30] sm:$0xff] %vm1563, %v1480
        %1571 = vst.msk [vmem:[%s331 + $0x38] sm:$0xff] %vm1563, %v1482
        %1572 = vst.msk [vmem:[%s331 + $0x40] sm:$0xff] %vm1563, %v1484
        %1573 = vst.msk [vmem:[%s331 + $0x48] sm:$0xff] %vm1563, %v1486
        %1574 = vst.msk [vmem:[%s331 + $0x50] sm:$0xff] %vm1563, %v1488
        %1575 = vst.msk [vmem:[%s331 + $0x58] sm:$0xff] %vm1563, %v1490
        %1576 = vst.msk [vmem:[%s331 + $0x60] sm:$0xff] %vm1563, %v1492
        %1577 = vst.msk [vmem:[%s331 + $0x68] sm:$0xff] %vm1563, %v1494
        %1578 = vst.msk [vmem:[%s331 + $0x70] sm:$0xff] %vm1563, %v1496
        %1579 = vst.msk [vmem:[%s331 + $0x78] sm:$0xff] %vm1563, %v1498
        %1580 = vst.msk [vmem:[%s331 + $0x80] sm:$0xff] %vm1563, %v1500
        %1581 = vst.msk [vmem:[%s331 + $0x88] sm:$0xff] %vm1563, %v1502
        %1582 = vst.msk [vmem:[%s331 + $0x90] sm:$0xff] %vm1563, %v1504
        %1583 = vst.msk [vmem:[%s331 + $0x98] sm:$0xff] %vm1563, %v1506
        %1584 = vst.msk [vmem:[%s331 + $0xa0] sm:$0xff] %vm1563, %v1508
        %1585 = vst.msk [vmem:[%s331 + $0xa8] sm:$0xff] %vm1563, %v1510
        %1586 = vst.msk [vmem:[%s331 + $0xb0] sm:$0xff] %vm1563, %v1512
        %1587 = vst.msk [vmem:[%s331 + $0xb8] sm:$0xff] %vm1563, %v1514
        %1588 = vst.msk [vmem:[%s331 + $0xc0] sm:$0xff] %vm1563, %v1516
        %1589 = vst.msk [vmem:[%s331 + $0xc8] sm:$0xff] %vm1563, %v1518
        %1590 = vst.msk [vmem:[%s331 + $0xd0] sm:$0xff] %vm1563, %v1520
        %1591 = vst.msk [vmem:[%s331 + $0xd8] sm:$0xff] %vm1563, %v1522
        %1592 = vst.msk [vmem:[%s331 + $0xe0] sm:$0xff] %vm1563, %v1524
        %1593 = vst.msk [vmem:[%s331 + $0xe8] sm:$0xff] %vm1563, %v1526
        %1594 = vst.msk [vmem:[%s331 + $0xf0] sm:$0xff] %vm1563, %v1528
        %1595 = vst.msk [vmem:[%s331 + $0xf8] sm:$0xff] %vm1563, %v1530
        %s1596 = sand.u32 %s213, 1
        %s1597 = scalar_lea.sflag [#allocation3], %s1596
        %s1598 = sand.u32 %s213, 1
        %s1599 = smul.addr %s1598, 256
        %s1600 = scalar_lea.vmem [#allocation2], %s1599
        // Predicated region
        $region53: #{tpu_custom_call.1} parent=51 // pred_check
          %p1601 = pneg %p223
        $region54: #{tpu_custom_call.1} parent=51 // pred_check_branch
          %1603 = sbr.rel (%p1601) target = $region56
        $region55: #{tpu_custom_call.1} parent=51 // pred_region
          %s1604 = smul.u32 32, %s22
          %1606 = vsyncadd %s1597, 0
          %s1607 = smul.addr %s1604, 8
          %s1608 = scalar_lea.hbm %s8, %s1607
          %s1609 = sshll.u32 %s1600, 4
          %s1610 = int_to_ptr.vmem [resolvable:$true] %s1609
          %s1611 = sshll.u32 %s1608, 4
          %s1612 = int_to_ptr.hbm [resolvable:$true] %s1611
          %1617 = dma.vmem_to_hbm [thread:$0]  %s1610, 4096, %s1612, %s1597, 128, 128, 8
        $region56: #{tpu_custom_call.1} parent=51 // pred_fallthru
          _
      $region52: #{tpu_custom_call.1} parent=5 // pred_fallthru
        _
      %p1618 = scmp.le.s32.totalorder 2, %s17
      // Predicated region
      $region57: #{tpu_custom_call.1} parent=5 // pred_check
        %p1619 = pneg %p1618
      $region58: #{tpu_custom_call.1} parent=5 // pred_check_branch
        %1621 = sbr.rel (%p1619) target = $region60
      $region59: #{tpu_custom_call.1} parent=5 // pred_region
        %s1622 = ssub.s32 %s17, 2
        // Predicated region
        $region61: #{tpu_custom_call.1} parent=59 // pred_check
          %p1623 = pneg %p229
        $region62: #{tpu_custom_call.1} parent=59 // pred_check_branch
          %1625 = sbr.rel (%p1623) target = $region64
        $region63: #{tpu_custom_call.1} parent=59 // pred_region
          %s1626 = sand.u32 %s214, 1
          %s1627 = scalar_lea.sflag [#allocation3], %s1626
          %s1628 = sand.u32 %s214, 1
          %s1629 = smul.addr %s1628, 256
          %s1630 = scalar_lea.vmem [#allocation2], %s1629
          %1632 = dma.done %s1627, 4096
        $region64: #{tpu_custom_call.1} parent=59 // pred_fallthru
          _
      $region60: #{tpu_custom_call.1} parent=5 // pred_fallthru
        _
    $region6: #{tpu_custom_call.1} parent=1 // loop_footer
      %s21 = sadd.s32 1, %s17
    $region7: #{tpu_custom_call.1} parent=1 // loop_footer_branch
      %16 = sbr.rel target = $region3
    $region8: #{tpu_custom_call.1} parent=1 // loop_exit
      _
    %1633 = vsyncpa [#allocation3], 1
    %s1634 = scalar_lea.sflag [#allocation3], 1
    %1635 = vsyncpa %s1634, 1

</llo_original>
